<compile_context>
chip_gen: v7x
topology: tpu7x:2x2x1
jax: 0.10.0
libtpu: 0.0.40
codegen_flags: <defaults>
</compile_context>

<pallas_src>
import numpy as np
import jax
import jax.numpy as jnp
from jax import lax
from jax.experimental import pallas as pl
from jax.experimental.pallas import tpu as pltpu


def _leaky_relu(x, slope=0.2):
    # One vmax instead of compare+select (valid for slope in [0, 1)).
    return jnp.maximum(x, slope * x)


# ----------------------------- Pallas kernel --------------------------------

def _make_resblock_kernel(H, images_per_block):
    """Fused ResidualBlock over a lane-dense (rows, W*C) slab.

    rows = images_per_block * H (whole images stacked on the sublane axis),
    last dim = W*C on the 128-wide lane axis.  Requires Cin == Cout
    (downsample=False residual add).
    """
    multi = images_per_block > 1

    def kernel(x_ref, m1_ref, b1_ref, m2_ref, b2_ref, o_ref):
        if multi:
            # (R,1) per-image boundary masks: tiny iota + two compares,
            # broadcast inside the selects below -- O(1) VPU passes instead
            # of 2*nimg full-slab compare+OR passes.
            R = x_ref.shape[0]
            rr = lax.broadcasted_iota(jnp.int32, (R, 1), 0) % H
            not_top = rr != 0
            not_bot = rr != (H - 1)

        def conv3x3(t, m_ref, b_ref):
            # ky = 0/2 taps are +-1 row shifts (sublane slice+concat); rows
            # that would read across an image's top/bottom border are zeroed
            # (== the conv's zero padding).
            zrow = jnp.zeros((1, t.shape[1]), t.dtype)
            up = jnp.concatenate([zrow, t[:-1, :]], axis=0)   # up[r] = t[r-1]
            dn = jnp.concatenate([t[1:, :], zrow], axis=0)    # dn[r] = t[r+1]
            if multi:
                up = jnp.where(not_top, up, 0.0)
                dn = jnp.where(not_bot, dn, 0.0)
            # Lane-axis concat of 128-aligned pieces -> ONE K=3*W*Cin matmul
            # on the MXU (bf16 inputs, f32 accumulation).
            cat = jnp.concatenate([up, t, dn], axis=1).astype(jnp.bfloat16)
            acc = jnp.dot(cat, m_ref[...], preferred_element_type=jnp.float32)
            return acc + b_ref[...]

        h1 = _leaky_relu(conv3x3(x_ref[...], m1_ref, b1_ref))
        h2 = conv3x3(h1, m2_ref, b2_ref)
        # Reload x right before the residual add (still resident in VMEM)
        # instead of holding it live across both convs -> bounds vreg live
        # ranges when block_rows grows.
        o_ref[...] = _leaky_relu(h2 + x_ref[...])

    return kernel


# --------------------------- parameter plumbing ------------------------------

def _band_matrix(w_hwio, width):
    """(3,3,Cin,Cout) HWIO weight -> stacked (3*width*Cin, width*Cout) band.

    Row block ky holds M[ky][wi*Cin+ci, wo*Cout+co] = w[ky, wi-wo+1, ci, co]
    when |wi-wo| <= 1, else 0 -- folds the kx taps and the width zero-padding
    into a single matmul; the three ky blocks are stacked row-wise so the
    kernel needs exactly one dot per conv.

    TODO(synk): footprint is 3*(W*Cin)*(W*Cout)*2B (bf16) with density only
    3/W -- ~96 KiB here, but for W*C >~ 1024 tile the width dimension (fold a
    1-column halo into the band) to stay inside v7x's 64 MiB VMEM and keep
    MXU utilization up.
    """
    kh, kw, cin, cout = w_hwio.shape
    assert kh == 3 and kw == 3
    kx = jnp.arange(kw)
    wi = jnp.arange(width)
    wo = jnp.arange(width)
    sel = (wi[None, :, None] == (wo[None, None, :] + kx[:, None, None] - 1))
    sel = sel.astype(w_hwio.dtype)                       # (kw, width, width)
    m = jnp.einsum('xiw,yxcd->yicwd', sel, w_hwio)       # (3, W, Cin, W, Cout)
    return m.reshape(kh * width * cin, width * cout)     # ky-stacked rows


def _pick_images_per_step(N, H):
    """Rows-per-grid-step heuristic.

    One balanced step per TensorCore (v7x has 2 TCs; v5e/v6e have 1, where an
    extra step would just be serial overhead).  For large batches cap
    block_rows at ~512 so M fills the MXU and a >=2-step grid lets BlockSpec
    double-buffering overlap the activation DMA with compute.
    """
    try:
        kind = jax.devices()[0].device_kind.lower()
    except Exception:
        kind = ""
    n_tc = 2 if ("v7" in kind or "7x" in kind) else 1
    ips = min(max(1, N // n_tc), max(1, 512 // H))
    while N % ips:            # blocks must tile the batch exactly
        ips -= 1
    return ips


def residual_block_forward_nhwc(x_nhwc, w1_hwio, b1, w2_hwio, b2):
    """Pallas-backed forward on NHWC input (no transposes, reshape only)."""
    x_nhwc = x_nhwc.astype(jnp.float32)
    N, H, W, Cin = x_nhwc.shape
    Cout = w1_hwio.shape[-1]
    assert Cin == Cout, "downsample=False residual add requires Cin == Cout"

    # (N*H, W*C): lane axis carries W*C (= 128 at the test size) -> every
    # load/store/matmul operand is lane-dense, no masked partial stores.
    x2d = x_nhwc.reshape(N * H, W * Cin)

    # Band matrices in bf16 (halves weight DMA/VMEM); biases stay f32.
    m1 = _band_matrix(w1_hwio.astype(jnp.float32), W).astype(jnp.bfloat16)
    m2 = _band_matrix(w2_hwio.astype(jnp.float32), W).astype(jnp.bfloat16)
    b1v = jnp.tile(b1.astype(jnp.float32), W).reshape(1, W * Cout)
    b2v = jnp.tile(b2.astype(jnp.float32), W).reshape(1, W * Cout)

    kin, kout = W * Cin, W * Cout
    ips = _pick_images_per_step(N, H)
    block_rows = ips * H
    grid = (N // ips,)

    out2d = pl.pallas_call(
        _make_resblock_kernel(H, ips),
        out_shape=jax.ShapeDtypeStruct((N * H, kout), jnp.float32),
        grid=grid,
        in_specs=[
            pl.BlockSpec((block_rows, kin), lambda i: (i, 0)),
            # Weight/bias index maps are constant -> blocks stay resident
            # across grid steps (no re-DMA).
            pl.BlockSpec((3 * kin, kout), lambda i: (0, 0)),
            pl.BlockSpec((1, kout), lambda i: (0, 0)),
            pl.BlockSpec((3 * kout, kout), lambda i: (0, 0)),
            pl.BlockSpec((1, kout), lambda i: (0, 0)),
        ],
        out_specs=pl.BlockSpec((block_rows, kout), lambda i: (i, 0)),
        compiler_params=pltpu.CompilerParams(
            dimension_semantics=("parallel",)),
    )(x2d, m1, b1v, m2, b2v)

    return out2d.reshape(N, H, W, Cout)


def residual_block_forward(x_nchw, w1_hwio, b1, w2_hwio, b2):
    """NCHW wrapper (PyTorch layout parity).

    The transposes live inside the same jit as the Pallas call so XLA can
    fuse them with the producer/consumer; NHWC callers should use
    residual_block_forward_nhwc directly and skip them entirely.
    """
    x_nhwc = jnp.transpose(x_nchw, (0, 2, 3, 1))
    y = residual_block_forward_nhwc(x_nhwc, w1_hwio, b1, w2_hwio, b2)
    return jnp.transpose(y, (0, 3, 1, 2))


# --------------------------- glue: spectral norm -----------------------------

def spectral_normalize(w_oihw, n_iter=50):
    """Divide a conv weight (OIHW) by its spectral norm (power iteration).

    Note: PyTorch's nn.utils.spectral_norm does ONE iteration per forward with
    persistent u/v buffers; this converged version matches it only once the
    PyTorch buffers have converged (parameter preprocessing, not the hot path).
    """
    m = w_oihw.reshape(w_oihw.shape[0], -1)
    v = jnp.ones((m.shape[1],), jnp.float32) / jnp.sqrt(float(m.shape[1]))

    def body(_, v):
        u = m @ v
        u = u / (jnp.linalg.norm(u) + 1e-12)
        v = m.T @ u
        v = v / (jnp.linalg.norm(v) + 1e-12)
        return v

    v = lax.fori_loop(0, n_iter, body, v)
    u = m @ v
    u = u / (jnp.linalg.norm(u) + 1e-12)
    sigma = jnp.dot(u, m @ v)
    return w_oihw / sigma


# --------------------------- pure-JAX references ------------------------------

def ref_forward(x_nchw, w1_hwio, b1, w2_hwio, b2, matmul_dtype=jnp.float32):
    """lax.conv reference.  matmul_dtype=jnp.bfloat16 reproduces the kernel's
    mixed-precision policy (bf16 matmul inputs, f32 accumulation, f32 VPU +
    residual) for a tight structural check."""
    x = jnp.transpose(x_nchw, (0, 2, 3, 1)).astype(jnp.float32)

    def conv(t, w, b):
        dn = lax.conv_dimension_numbers(t.shape, w.shape,
                                        ('NHWC', 'HWIO', 'NHWC'))
        y = lax.conv_general_dilated(
            t.astype(matmul_dtype), w.astype(matmul_dtype), (1, 1), 'SAME',
            dimension_numbers=dn, preferred_element_type=jnp.float32)
        return y + b.astype(jnp.float32)

    h = _leaky_relu(conv(x, w1_hwio, b1))
    h2 = conv(h, w2_hwio, b2)
    y = _leaky_relu(h2 + x)
    return jnp.transpose(y, (0, 3, 1, 2))


if __name__ == "__main__":
    N, Cin, H, W = 2, 8, 16, 16
    Cout = 8            # downsample=False requires Cin == Cout

    key = jax.random.PRNGKey(0)
    kx_, kw1, kb1, kw2, kb2 = jax.random.split(key, 5)

    x = jax.random.normal(kx_, (N, Cin, H, W), jnp.float32)

    # Conv weights in PyTorch OIHW layout, spectral-normalized, then -> HWIO.
    w1_oihw = jax.random.normal(kw1, (Cout, Cin, 3, 3), jnp.float32) * 0.2
    w2_oihw = jax.random.normal(kw2, (Cout, Cout, 3, 3), jnp.float32) * 0.2
    b1 = jax.random.normal(kb1, (Cout,), jnp.float32) * 0.1
    b2 = jax.random.normal(kb2, (Cout,), jnp.float32) * 0.1

    w1_hwio = jnp.transpose(spectral_normalize(w1_oihw), (2, 3, 1, 0))
    w2_hwio = jnp.transpose(spectral_normalize(w2_oihw), (2, 3, 1, 0))

    fwd = jax.jit(residual_block_forward)
    out = jax.block_until_ready(fwd(x, w1_hwio, b1, w2_hwio, b2))
    assert out.shape == (N, Cout, H, W), out.shape

    # 1) Tight check against a reference with the SAME mixed-precision policy
    #    (validates band matrices, halo masks, fused matmul, residual).
    ref_match = ref_forward(x, w1_hwio, b1, w2_hwio, b2,
                            matmul_dtype=jnp.bfloat16)
    np.testing.assert_allclose(np.asarray(out), np.asarray(ref_match),
                               rtol=2e-3, atol=2e-3)
    # 2) Check against the full-f32 module semantics within the expected
    #    bf16-MXU-input tolerance.
    ref_f32 = ref_forward(x, w1_hwio, b1, w2_hwio, b2,
                          matmul_dtype=jnp.float32)
    np.testing.assert_allclose(np.asarray(out), np.asarray(ref_f32),
                               rtol=1e-2, atol=1e-2)
    print("KERNEL_OK")
</pallas_src>

<mosaic_0001>
module attributes {stable_mosaic.version = 11 : i64} {
  func.func @kernel(%arg0: i32, %arg1: memref<32x128xf32, #tpu.memory_space<vmem>>, %arg2: memref<384x128xbf16, #tpu.memory_space<vmem>>, %arg3: memref<1x128xf32, #tpu.memory_space<vmem>>, %arg4: memref<384x128xbf16, #tpu.memory_space<vmem>>, %arg5: memref<1x128xf32, #tpu.memory_space<vmem>>, %arg6: memref<32x128xf32, #tpu.memory_space<vmem>>) attributes {dimension_semantics = [#tpu.dimension_semantics<parallel>], iteration_bounds = array<i64: 1>, scalar_prefetch = 0 : i64, scratch_operands = 0 : i64, tpu.core_type = #tpu.core_type<tc>, window_params = [{transform_indices = @transform_0, window_bounds = array<i64: 32, 128>}, {pipeline_mode = #tpu.pipeline_mode<synchronous>, transform_indices = @transform_1, window_bounds = array<i64: 384, 128>}, {pipeline_mode = #tpu.pipeline_mode<synchronous>, transform_indices = @transform_2, window_bounds = array<i64: 1, 128>}, {pipeline_mode = #tpu.pipeline_mode<synchronous>, transform_indices = @transform_3, window_bounds = array<i64: 384, 128>}, {pipeline_mode = #tpu.pipeline_mode<synchronous>, transform_indices = @transform_4, window_bounds = array<i64: 1, 128>}, {transform_indices = @transform_5, window_bounds = array<i64: 32, 128>}]} {
    %0 = tpu.iota {dimensions = array<i32: 0>} : vector<32x1xi32>
    %c16_i32 = arith.constant 16 : i32
    %c0_i32 = arith.constant 0 : i32
    %1 = arith.cmpi eq, %c16_i32, %c0_i32 : i32
    %c1_i32 = arith.constant 1 : i32
    %2 = arith.select %1, %c1_i32, %c16_i32 : i32
    %3 = vector.broadcast %2 : i32 to vector<32x1xi32>
    %4 = arith.remsi %0, %3 : vector<32x1xi32>
    %c0_i32_0 = arith.constant 0 : i32
    %5 = vector.broadcast %c0_i32_0 : i32 to vector<32x1xi32>
    %6 = arith.cmpi ne, %4, %5 : vector<32x1xi32>
    %c0_i32_1 = arith.constant 0 : i32
    %7 = vector.broadcast %c0_i32_1 : i32 to vector<32x1xi32>
    %8 = arith.cmpi slt, %4, %7 : vector<32x1xi32>
    %c0_i32_2 = arith.constant 0 : i32
    %9 = arith.cmpi slt, %2, %c0_i32_2 : i32
    %10 = vector.broadcast %9 : i1 to vector<32x1xi1>
    %11 = vector.broadcast %10 : vector<32x1xi1> to vector<32x1xi1>
    %12 = arith.xori %8, %11 : vector<32x1xi1>
    %13 = arith.andi %12, %6 : vector<32x1xi1>
    %14 = vector.broadcast %2 : i32 to vector<32x1xi32>
    %15 = arith.addi %4, %14 : vector<32x1xi32>
    %16 = arith.select %13, %15, %4 : vector<32x1xi1>, vector<32x1xi32>
    %c0_i32_3 = arith.constant 0 : i32
    %17 = vector.broadcast %c0_i32_3 : i32 to vector<32x1xi32>
    %18 = arith.cmpi ne, %16, %17 : vector<32x1xi32>
    %c15_i32 = arith.constant 15 : i32
    %19 = vector.broadcast %c15_i32 : i32 to vector<32x1xi32>
    %20 = arith.cmpi ne, %16, %19 : vector<32x1xi32>
    %c0 = arith.constant 0 : index
    %c0_4 = arith.constant 0 : index
    %21 = vector.load %arg1[%c0, %c0_4] : memref<32x128xf32, #tpu.memory_space<vmem>>, vector<32x128xf32>
    %cst = arith.constant 0.000000e+00 : f32
    %22 = vector.broadcast %cst : f32 to vector<1x128xf32>
    %23 = vector.extract_strided_slice %21 {offsets = [0, 0], sizes = [31, 128], strides = [1, 1]} : vector<32x128xf32> to vector<31x128xf32>
    %24 = tpu.concatenate %22, %23 in 0 : vector<1x128xf32>, vector<31x128xf32> -> vector<32x128xf32>
    %25 = vector.extract_strided_slice %21 {offsets = [1, 0], sizes = [31, 128], strides = [1, 1]} : vector<32x128xf32> to vector<31x128xf32>
    %26 = tpu.concatenate %25, %22 in 0 : vector<31x128xf32>, vector<1x128xf32> -> vector<32x128xf32>
    %cst_5 = arith.constant 0.000000e+00 : f32
    %27 = vector.shape_cast %18 : vector<32x1xi1> to vector<32x1xi1>
    %28 = vector.broadcast %27 : vector<32x1xi1> to vector<32x128xi1>
    %29 = vector.broadcast %cst_5 : f32 to vector<32x128xf32>
    %30 = arith.select %28, %24, %29 : vector<32x128xi1>, vector<32x128xf32>
    %cst_6 = arith.constant 0.000000e+00 : f32
    %31 = vector.shape_cast %20 : vector<32x1xi1> to vector<32x1xi1>
    %32 = vector.broadcast %31 : vector<32x1xi1> to vector<32x128xi1>
    %33 = vector.broadcast %cst_6 : f32 to vector<32x128xf32>
    %34 = arith.select %32, %26, %33 : vector<32x128xi1>, vector<32x128xf32>
    %35 = tpu.concatenate %30, %21, %34 in 1 : vector<32x128xf32>, vector<32x128xf32>, vector<32x128xf32> -> vector<32x384xf32>
    %36 = arith.truncf %35 : vector<32x384xf32> to vector<32x384xbf16>
    %c0_7 = arith.constant 0 : index
    %c0_8 = arith.constant 0 : index
    %37 = vector.load %arg2[%c0_7, %c0_8] : memref<384x128xbf16, #tpu.memory_space<vmem>>, vector<384x128xbf16>
    %cst_9 = arith.constant dense<0.000000e+00> : vector<32x128xf32>
    %38 = tpu.matmul %36, %37, %cst_9 {dimension_numbers = #tpu.dot_dimension_numbers<[1], [0], [0], [1], [0, 0, 1, 1], [], []>} : vector<32x384xbf16>, vector<384x128xbf16>, vector<32x128xf32> -> vector<32x128xf32>
    %c0_10 = arith.constant 0 : index
    %c0_11 = arith.constant 0 : index
    %39 = vector.load %arg3[%c0_10, %c0_11] : memref<1x128xf32, #tpu.memory_space<vmem>>, vector<1x128xf32>
    %40 = vector.broadcast %39 : vector<1x128xf32> to vector<32x128xf32>
    %41 = arith.addf %38, %40 : vector<32x128xf32>
    %cst_12 = arith.constant 2.000000e-01 : f32
    %42 = vector.broadcast %cst_12 : f32 to vector<32x128xf32>
    %43 = arith.mulf %42, %41 : vector<32x128xf32>
    %44 = arith.maximumf %41, %43 : vector<32x128xf32>
    %cst_13 = arith.constant 0.000000e+00 : f32
    %45 = vector.broadcast %cst_13 : f32 to vector<1x128xf32>
    %46 = vector.extract_strided_slice %44 {offsets = [0, 0], sizes = [31, 128], strides = [1, 1]} : vector<32x128xf32> to vector<31x128xf32>
    %47 = tpu.concatenate %45, %46 in 0 : vector<1x128xf32>, vector<31x128xf32> -> vector<32x128xf32>
    %48 = vector.extract_strided_slice %44 {offsets = [1, 0], sizes = [31, 128], strides = [1, 1]} : vector<32x128xf32> to vector<31x128xf32>
    %49 = tpu.concatenate %48, %45 in 0 : vector<31x128xf32>, vector<1x128xf32> -> vector<32x128xf32>
    %cst_14 = arith.constant 0.000000e+00 : f32
    %50 = vector.shape_cast %18 : vector<32x1xi1> to vector<32x1xi1>
    %51 = vector.broadcast %50 : vector<32x1xi1> to vector<32x128xi1>
    %52 = vector.broadcast %cst_14 : f32 to vector<32x128xf32>
    %53 = arith.select %51, %47, %52 : vector<32x128xi1>, vector<32x128xf32>
    %cst_15 = arith.constant 0.000000e+00 : f32
    %54 = vector.shape_cast %20 : vector<32x1xi1> to vector<32x1xi1>
    %55 = vector.broadcast %54 : vector<32x1xi1> to vector<32x128xi1>
    %56 = vector.broadcast %cst_15 : f32 to vector<32x128xf32>
    %57 = arith.select %55, %49, %56 : vector<32x128xi1>, vector<32x128xf32>
    %58 = tpu.concatenate %53, %44, %57 in 1 : vector<32x128xf32>, vector<32x128xf32>, vector<32x128xf32> -> vector<32x384xf32>
    %59 = arith.truncf %58 : vector<32x384xf32> to vector<32x384xbf16>
    %c0_16 = arith.constant 0 : index
    %c0_17 = arith.constant 0 : index
    %60 = vector.load %arg4[%c0_16, %c0_17] : memref<384x128xbf16, #tpu.memory_space<vmem>>, vector<384x128xbf16>
    %cst_18 = arith.constant dense<0.000000e+00> : vector<32x128xf32>
    %61 = tpu.matmul %59, %60, %cst_18 {dimension_numbers = #tpu.dot_dimension_numbers<[1], [0], [0], [1], [0, 0, 1, 1], [], []>} : vector<32x384xbf16>, vector<384x128xbf16>, vector<32x128xf32> -> vector<32x128xf32>
    %c0_19 = arith.constant 0 : index
    %c0_20 = arith.constant 0 : index
    %62 = vector.load %arg5[%c0_19, %c0_20] : memref<1x128xf32, #tpu.memory_space<vmem>>, vector<1x128xf32>
    %63 = vector.broadcast %62 : vector<1x128xf32> to vector<32x128xf32>
    %64 = arith.addf %61, %63 : vector<32x128xf32>
    %c0_21 = arith.constant 0 : index
    %c0_22 = arith.constant 0 : index
    %65 = vector.load %arg1[%c0_21, %c0_22] : memref<32x128xf32, #tpu.memory_space<vmem>>, vector<32x128xf32>
    %66 = arith.addf %64, %65 : vector<32x128xf32>
    %cst_23 = arith.constant 2.000000e-01 : f32
    %67 = vector.broadcast %cst_23 : f32 to vector<32x128xf32>
    %68 = arith.mulf %67, %66 : vector<32x128xf32>
    %69 = arith.maximumf %66, %68 : vector<32x128xf32>
    %c0_24 = arith.constant 0 : index
    %c0_25 = arith.constant 0 : index
    %70 = vector.load %arg6[%c0_24, %c0_25] : memref<32x128xf32, #tpu.memory_space<vmem>>, vector<32x128xf32>
    tpu.vector_store %arg6[%c0_24, %c0_25], %69 {strides = array<i32>} : memref<32x128xf32, #tpu.memory_space<vmem>>, vector<32x128xf32>,
    return
  }
  func.func @transform_0(%arg0: i32) -> (i32, i32) {
    %c0_i32 = arith.constant 0 : i32
    %c0_i32_0 = arith.constant 0 : i32
    return %arg0, %c0_i32 : i32, i32
  }
  func.func @transform_1(%arg0: i32) -> (i32, i32) {
    %c0_i32 = arith.constant 0 : i32
    %c0_i32_0 = arith.constant 0 : i32
    %c0_i32_1 = arith.constant 0 : i32
    return %c0_i32, %c0_i32_0 : i32, i32
  }
  func.func @transform_2(%arg0: i32) -> (i32, i32) {
    %c0_i32 = arith.constant 0 : i32
    %c0_i32_0 = arith.constant 0 : i32
    %c0_i32_1 = arith.constant 0 : i32
    return %c0_i32, %c0_i32_0 : i32, i32
  }
  func.func @transform_3(%arg0: i32) -> (i32, i32) {
    %c0_i32 = arith.constant 0 : i32
    %c0_i32_0 = arith.constant 0 : i32
    %c0_i32_1 = arith.constant 0 : i32
    return %c0_i32, %c0_i32_0 : i32, i32
  }
  func.func @transform_4(%arg0: i32) -> (i32, i32) {
    %c0_i32 = arith.constant 0 : i32
    %c0_i32_0 = arith.constant 0 : i32
    %c0_i32_1 = arith.constant 0 : i32
    return %c0_i32, %c0_i32_0 : i32, i32
  }
  func.func @transform_5(%arg0: i32) -> (i32, i32) {
    %c0_i32 = arith.constant 0 : i32
    %c0_i32_0 = arith.constant 0 : i32
    return %arg0, %c0_i32 : i32, i32
  }
}

</mosaic_0001>

<llo_original>
// kernel: tile.13
$region0: #{tile.13}
  #allocation0 [shape = 's32[1]{0}', space=sflag, size = 0x4, scoped, tag = 'scoped memory for tile.13']
  %s0 = inlined_call_operand.vmem [shape: f32[8], index: 0, kind: input, shape index: {}]
  %s1 = inlined_call_operand.vmem [shape: f32[16,8], index: 1, kind: output, shape index: {}]
  // Predicated region
  $region2: #{tile.13} parent=0 // pred_check
    _
  $region3: #{tile.13} parent=0 // pred_check_branch
    %3 = sbr.rel (0) target = $region5
  $region4: #{tile.13} parent=0 // pred_region
    _
  $region5: #{tile.13} parent=0 // pred_fallthru
    _
  %v4 = vld [vmem:[%s0] ss:$0 sm:$0xff]
  %5 = vst [vmem:[%s1] sm:$0xff] %v4
  %s6 = scalar_lea.vmem %s1, 8
  %7 = vst [vmem:[%s6] sm:$0xff] %v4

// kernel: tile.14
$region0: #{tile.14}
  %s0 = inlined_call_operand.vmem [shape: f32[16,8], index: 0, kind: input, shape index: {}]
  %s1 = inlined_call_operand.vmem [shape: f32[1,128], index: 1, kind: output, shape index: {}]
  $region1: #{tile.14} parent=0
    #allocation0 [shape = 'u8[4096]{0}', space=vmem, size = 0x1000, scoped, tag = 'scoped mem for output reshape']
    %v2 = vld [vmem:[%s0] sm:$0x1]
    %vm3 = vcmask 64512
    %4 = vst.msk [vmem:[#allocation0] sm:$0x1] %vm3, %v2
    %s5 = scalar_lea.vmem %s0, 15
    %v6 = vld [vmem:[%s5] sm:$0x1]
    %7 = vrot.lane.b32.xlu0 %v6, 120
    %v8 = vpop.permute.xlu0 %7
    %vm9 = vcmask 1048512
    %10 = vst.msk [vmem:[#allocation0] sm:$0x1] %vm9, %v8
    %s11 = scalar_lea.vmem %s0, 14
    %v12 = vld [vmem:[%s11] sm:$0x1]
    %13 = vrot.lane.b32.xlu0 %v12, 112
    %v14 = vpop.permute.xlu0 %13
    %vm15 = vcmask 982912
    %16 = vst.msk [vmem:[#allocation0] sm:$0x1] %vm15, %v14
    %s17 = scalar_lea.vmem %s0, 13
    %v18 = vld [vmem:[%s17] sm:$0x1]
    %19 = vrot.lane.b32.xlu0 %v18, 104
    %v20 = vpop.permute.xlu0 %19
    %vm21 = vcmask 917312
    %22 = vst.msk [vmem:[#allocation0] sm:$0x1] %vm21, %v20
    %s23 = scalar_lea.vmem %s0, 12
    %v24 = vld [vmem:[%s23] sm:$0x1]
    %25 = vrot.lane.b32.xlu0 %v24, 96
    %v26 = vpop.permute.xlu0 %25
    %vm27 = vcmask 851712
    %28 = vst.msk [vmem:[#allocation0] sm:$0x1] %vm27, %v26
    %s29 = scalar_lea.vmem %s0, 11
    %v30 = vld [vmem:[%s29] sm:$0x1]
    %31 = vrot.lane.b32.xlu0 %v30, 88
    %v32 = vpop.permute.xlu0 %31
    %vm33 = vcmask 786112
    %34 = vst.msk [vmem:[#allocation0] sm:$0x1] %vm33, %v32
    %s35 = scalar_lea.vmem %s0, 10
    %v36 = vld [vmem:[%s35] sm:$0x1]
    %37 = vrot.lane.b32.xlu0 %v36, 80
    %v38 = vpop.permute.xlu0 %37
    %vm39 = vcmask 720512
    %40 = vst.msk [vmem:[#allocation0] sm:$0x1] %vm39, %v38
    %s41 = scalar_lea.vmem %s0, 9
    %v42 = vld [vmem:[%s41] sm:$0x1]
    %43 = vrot.lane.b32.xlu0 %v42, 72
    %v44 = vpop.permute.xlu0 %43
    %vm45 = vcmask 654912
    %46 = vst.msk [vmem:[#allocation0] sm:$0x1] %vm45, %v44
    %s47 = scalar_lea.vmem %s0, 8
    %v48 = vld [vmem:[%s47] sm:$0x1]
    %49 = vrot.lane.b32.xlu0 %v48, 64
    %v50 = vpop.permute.xlu0 %49
    %vm51 = vcmask 589312
    %52 = vst.msk [vmem:[#allocation0] sm:$0x1] %vm51, %v50
    %s53 = scalar_lea.vmem %s0, 7
    %v54 = vld [vmem:[%s53] sm:$0x1]
    %55 = vrot.lane.b32.xlu0 %v54, 56
    %v56 = vpop.permute.xlu0 %55
    %vm57 = vcmask 523712
    %58 = vst.msk [vmem:[#allocation0] sm:$0x1] %vm57, %v56
    %s59 = scalar_lea.vmem %s0, 6
    %v60 = vld [vmem:[%s59] sm:$0x1]
    %61 = vrot.lane.b32.xlu0 %v60, 48
    %v62 = vpop.permute.xlu0 %61
    %vm63 = vcmask 458112
    %64 = vst.msk [vmem:[#allocation0] sm:$0x1] %vm63, %v62
    %s65 = scalar_lea.vmem %s0, 5
    %v66 = vld [vmem:[%s65] sm:$0x1]
    %67 = vrot.lane.b32.xlu0 %v66, 40
    %v68 = vpop.permute.xlu0 %67
    %vm69 = vcmask 392512
    %70 = vst.msk [vmem:[#allocation0] sm:$0x1] %vm69, %v68
    %s71 = scalar_lea.vmem %s0, 4
    %v72 = vld [vmem:[%s71] sm:$0x1]
    %73 = vrot.lane.b32.xlu0 %v72, 32
    %v74 = vpop.permute.xlu0 %73
    %vm75 = vcmask 326912
    %76 = vst.msk [vmem:[#allocation0] sm:$0x1] %vm75, %v74
    %s77 = scalar_lea.vmem %s0, 3
    %v78 = vld [vmem:[%s77] sm:$0x1]
    %79 = vrot.lane.b32.xlu0 %v78, 24
    %v80 = vpop.permute.xlu0 %79
    %vm81 = vcmask 261312
    %82 = vst.msk [vmem:[#allocation0] sm:$0x1] %vm81, %v80
    %s83 = scalar_lea.vmem %s0, 2
    %v84 = vld [vmem:[%s83] sm:$0x1]
    %85 = vrot.lane.b32.xlu0 %v84, 16
    %v86 = vpop.permute.xlu0 %85
    %vm87 = vcmask 195712
    %88 = vst.msk [vmem:[#allocation0] sm:$0x1] %vm87, %v86
    %s89 = scalar_lea.vmem %s0, 1
    %v90 = vld [vmem:[%s89] sm:$0x1]
    %91 = vrot.lane.b32.xlu0 %v90, 8
    %v92 = vpop.permute.xlu0 %91
    %vm93 = vcmask 130112
    %94 = vst.msk [vmem:[#allocation0] sm:$0x1] %vm93, %v92
    %s96 = sshllo.u32 0, 1
    %v98 = vld [vmem:[#allocation0] sm:%s96]
    %s99 = sshllo.u32 0, 1
    %100 = vst [vmem:[%s1] sm:%s99] %v98

// kernel: residual_block_forward.1
$region0: #{residual_block_forward.1}
  #allocation0 [shape = 'u32[]', space=smem, size = 0x4, offset = 0x4, fixed_abs, tag = 'smem constant byte address 0x4 - core index']
  #allocation1 [shape = 'u32[144,128]{1,0:T(1,128)}', space=vmem, size = 0x12000, scoped, tag = 'internal scratch']
  %s0 = inlined_call_operand.vmem [shape: f32[32,128], index: 0, kind: input, shape index: {}]
  %s1 = inlined_call_operand.vmem [shape: bf16[384,128], index: 1, kind: input, shape index: {}]
  %s2 = inlined_call_operand.vmem [shape: f32[1,128], index: 2, kind: input, shape index: {}]
  %s3 = inlined_call_operand.vmem [shape: bf16[384,128], index: 3, kind: input, shape index: {}]
  %s4 = inlined_call_operand.vmem [shape: f32[1,128], index: 4, kind: input, shape index: {}]
  %s5 = inlined_call_operand.vmem [shape: f32[32,128], index: 5, kind: output, shape index: {}]
  %s6 = sld [smem:[#allocation0]]
  $region30: #{residual_block_forward.1} parent=0
    _
  %s8 = ssub.s32 1, %s6
  %s9 = scalar_select 0, %s8, %s6
  // Predicated region
  $region2: #{residual_block_forward.1} parent=0 // pred_check
    _
  $region3: #{residual_block_forward.1} parent=0 // pred_check_branch
    %11 = sbr.rel (0) target = $region5
  $region4: #{residual_block_forward.1} parent=0 // pred_region
    _
  $region5: #{residual_block_forward.1} parent=0 // pred_fallthru
    _
  // Predicated region
  $region6: #{residual_block_forward.1} parent=0 // pred_check
    _
  $region7: #{residual_block_forward.1} parent=0 // pred_check_branch
    %13 = sbr.rel (0) target = $region9
  $region8: #{residual_block_forward.1} parent=0 // pred_region
    _
  $region9: #{residual_block_forward.1} parent=0 // pred_fallthru
    _
  // Predicated region
  $region10: #{residual_block_forward.1} parent=0 // pred_check
    _
  $region11: #{residual_block_forward.1} parent=0 // pred_check_branch
    %15 = sbr.rel (0) target = $region13
  $region12: #{residual_block_forward.1} parent=0 // pred_region
    _
  $region13: #{residual_block_forward.1} parent=0 // pred_fallthru
    _
  // Predicated region
  $region14: #{residual_block_forward.1} parent=0 // pred_check
    _
  $region15: #{residual_block_forward.1} parent=0 // pred_check_branch
    %17 = sbr.rel (0) target = $region17
  $region16: #{residual_block_forward.1} parent=0 // pred_region
    _
  $region17: #{residual_block_forward.1} parent=0 // pred_fallthru
    _
  // Predicated region
  $region18: #{residual_block_forward.1} parent=0 // pred_check
    _
  $region19: #{residual_block_forward.1} parent=0 // pred_check_branch
    %19 = sbr.rel (0) target = $region21
  $region20: #{residual_block_forward.1} parent=0 // pred_region
    _
  $region21: #{residual_block_forward.1} parent=0 // pred_fallthru
    _
  %v21 = vlaneseq
  %v22 = vshrl.u32 %v21, 7
  %v23 = vadd.s32 %v22, 8
  %v24 = vadd.s32 %v22, 16
  %v25 = vadd.s32 %v22, 24
  %vm26 = vcmp.lt.s32.totalorder %v22, 0
  %v27 = vsub.s32 0, %v22
  %v28 = vsel %vm26, %v27, %v22
  %v29 = vshrl.u32 %v28, 4
  %v30 = vand.u32 %v28, 15
  %v31 = vsub.s32 0, %v30
  %v32 = vsel %vm26, %v31, %v30
  %vm33 = vcmp.lt.s32.totalorder %v23, 0
  %v34 = vsub.s32 0, %v23
  %v35 = vsel %vm33, %v34, %v23
  %v36 = vshrl.u32 %v35, 4
  %v37 = vand.u32 %v35, 15
  %v38 = vsub.s32 0, %v37
  %v39 = vsel %vm33, %v38, %v37
  %vm40 = vcmp.lt.s32.totalorder %v24, 0
  %v41 = vsub.s32 0, %v24
  %v42 = vsel %vm40, %v41, %v24
  %v43 = vshrl.u32 %v42, 4
  %v44 = vand.u32 %v42, 15
  %v45 = vsub.s32 0, %v44
  %v46 = vsel %vm40, %v45, %v44
  %vm47 = vcmp.lt.s32.totalorder %v25, 0
  %v48 = vsub.s32 0, %v25
  %v49 = vsel %vm47, %v48, %v25
  %v50 = vshrl.u32 %v49, 4
  %v51 = vand.u32 %v49, 15
  %v52 = vsub.s32 0, %v51
  %v53 = vsel %vm47, %v52, %v51
  %vm54 = vcmp.ne.s32.totalorder %v32, 0
  %vm55 = vcmp.ne.s32.totalorder %v39, 0
  %vm56 = vcmp.ne.s32.totalorder %v46, 0
  %vm57 = vcmp.ne.s32.totalorder %v53, 0
  %vm58 = vcmp.lt.s32.totalorder %v32, 0
  %vm59 = vcmp.lt.s32.totalorder %v39, 0
  %vm60 = vcmp.lt.s32.totalorder %v46, 0
  %vm61 = vcmp.lt.s32.totalorder %v53, 0
  %vm62 = vmand %vm58, %vm54
  %vm63 = vmand %vm59, %vm55
  %vm64 = vmand %vm60, %vm56
  %vm65 = vmand %vm61, %vm57
  %v66 = vadd.s32 %v32, 16
  %v67 = vadd.s32 %v39, 16
  %v68 = vadd.s32 %v46, 16
  %v69 = vadd.s32 %v53, 16
  %v70 = vsel %vm62, %v66, %v32
  %v71 = vsel %vm63, %v67, %v39
  %v72 = vsel %vm64, %v68, %v46
  %v73 = vsel %vm65, %v69, %v53
  %vm74 = vcmp.ne.s32.totalorder %v70, 0
  %vm75 = vcmp.ne.s32.totalorder %v71, 0
  %vm76 = vcmp.ne.s32.totalorder %v72, 0
  %vm77 = vcmp.ne.s32.totalorder %v73, 0
  %vm78 = vcmp.ne.s32.totalorder %v70, 15
  %vm79 = vcmp.ne.s32.totalorder %v71, 15
  %vm80 = vcmp.ne.s32.totalorder %v72, 15
  %vm81 = vcmp.ne.s32.totalorder %v73, 15
  %v82 = vld [vmem:[%s0] sm:$0xff]
  %v83 = vld [vmem:[%s0 + $0x8] sm:$0xff]
  %v84 = vld [vmem:[%s0 + $0x10] sm:$0xff]
  %v85 = vld [vmem:[%s0 + $0x18] sm:$0xff]
  %vm90 = vcmask 1040384
  %v91 = vrot.slane %v82, 7
  %v92 = vrot.slane %v83, 7
  %v93 = vsel %vm90, %v91, %v92
  %v94 = vrot.slane %v84, 7
  %v95 = vsel %vm90, %v92, %v94
  %v96 = vrot.slane %v85, 7
  %v97 = vsel %vm90, %v94, %v96
  %v102 = vsel %vm90, 0.0, %v91
  %vm103 = vcmask 1046528
  %v104 = vrot.slane %v82, 1
  %v105 = vrot.slane %v83, 1
  %v106 = vsel %vm103, %v104, %v105
  %v107 = vrot.slane %v84, 1
  %v108 = vsel %vm103, %v105, %v107
  %v109 = vrot.slane %v85, 1
  %v110 = vsel %vm103, %v107, %v109
  %v115 = vsel %vm103, %v109, 0.0
  %v116 = vsel %vm74, 1, 0
  %v117 = vsel %vm75, 1, 0
  %v118 = vsel %vm76, 1, 0
  %v119 = vsel %vm77, 1, 0
  %vm120 = vcmp.eq.s32.totalorder %v116, 1
  %vm121 = vcmp.eq.s32.totalorder %v117, 1
  %vm122 = vcmp.eq.s32.totalorder %v118, 1
  %vm123 = vcmp.eq.s32.totalorder %v119, 1
  %v124 = vsel %vm120, %v102, 0.0
  %v125 = vsel %vm121, %v93, 0.0
  %v126 = vsel %vm122, %v95, 0.0
  %v127 = vsel %vm123, %v97, 0.0
  %v128 = vsel %vm78, 1, 0
  %v129 = vsel %vm79, 1, 0
  %v130 = vsel %vm80, 1, 0
  %v131 = vsel %vm81, 1, 0
  %vm132 = vcmp.eq.s32.totalorder %v128, 1
  %vm133 = vcmp.eq.s32.totalorder %v129, 1
  %vm134 = vcmp.eq.s32.totalorder %v130, 1
  %vm135 = vcmp.eq.s32.totalorder %v131, 1
  %v136 = vsel %vm132, %v106, 0.0
  %v137 = vsel %vm133, %v108, 0.0
  %v138 = vsel %vm134, %v110, 0.0
  %v139 = vsel %vm135, %v115, 0.0
  %v140 = vpack.c.bf16 %v125, %v124
  %v141 = vpack.c.bf16 %v83, %v82
  %v142 = vpack.c.bf16 %v137, %v136
  %v143 = vpack.c.bf16 %v127, %v126
  %v144 = vpack.c.bf16 %v85, %v84
  %v145 = vpack.c.bf16 %v139, %v138
  %v146 = vld [vmem:[%s1] sm:$0xf]
  %v147 = vld [vmem:[%s1 + $0x4] sm:$0xf]
  %v148 = vld [vmem:[%s1 + $0x8] sm:$0xf]
  %v149 = vld [vmem:[%s1 + $0xc] sm:$0xf]
  %v150 = vld [vmem:[%s1 + $0x10] sm:$0xf]
  %v151 = vld [vmem:[%s1 + $0x14] sm:$0xf]
  %v152 = vld [vmem:[%s1 + $0x18] sm:$0xf]
  %v153 = vld [vmem:[%s1 + $0x1c] sm:$0xf]
  %v154 = vld [vmem:[%s1 + $0x20] sm:$0xf]
  %v155 = vld [vmem:[%s1 + $0x24] sm:$0xf]
  %v156 = vld [vmem:[%s1 + $0x28] sm:$0xf]
  %v157 = vld [vmem:[%s1 + $0x2c] sm:$0xf]
  %v158 = vld [vmem:[%s1 + $0x30] sm:$0xf]
  %v159 = vld [vmem:[%s1 + $0x34] sm:$0xf]
  %v160 = vld [vmem:[%s1 + $0x38] sm:$0xf]
  %v161 = vld [vmem:[%s1 + $0x3c] sm:$0xf]
  %v162 = vld [vmem:[%s1 + $0x40] sm:$0xf]
  %v163 = vld [vmem:[%s1 + $0x44] sm:$0xf]
  %v164 = vld [vmem:[%s1 + $0x48] sm:$0xf]
  %v165 = vld [vmem:[%s1 + $0x4c] sm:$0xf]
  %v166 = vld [vmem:[%s1 + $0x50] sm:$0xf]
  %v167 = vld [vmem:[%s1 + $0x54] sm:$0xf]
  %v168 = vld [vmem:[%s1 + $0x58] sm:$0xf]
  %v169 = vld [vmem:[%s1 + $0x5c] sm:$0xf]
  %v170 = vld [vmem:[%s1 + $0x60] sm:$0xf]
  %v171 = vld [vmem:[%s1 + $0x64] sm:$0xf]
  %v172 = vld [vmem:[%s1 + $0x68] sm:$0xf]
  %v173 = vld [vmem:[%s1 + $0x6c] sm:$0xf]
  %v174 = vld [vmem:[%s1 + $0x70] sm:$0xf]
  %v175 = vld [vmem:[%s1 + $0x74] sm:$0xf]
  %v176 = vld [vmem:[%s1 + $0x78] sm:$0xf]
  %v177 = vld [vmem:[%s1 + $0x7c] sm:$0xf]
  %v178 = vld [vmem:[%s1 + $0x80] sm:$0xf]
  %v179 = vld [vmem:[%s1 + $0x84] sm:$0xf]
  %v180 = vld [vmem:[%s1 + $0x88] sm:$0xf]
  %v181 = vld [vmem:[%s1 + $0x8c] sm:$0xf]
  %v182 = vld [vmem:[%s1 + $0x90] sm:$0xf]
  %v183 = vld [vmem:[%s1 + $0x94] sm:$0xf]
  %v184 = vld [vmem:[%s1 + $0x98] sm:$0xf]
  %v185 = vld [vmem:[%s1 + $0x9c] sm:$0xf]
  %v186 = vld [vmem:[%s1 + $0xa0] sm:$0xf]
  %v187 = vld [vmem:[%s1 + $0xa4] sm:$0xf]
  %v188 = vld [vmem:[%s1 + $0xa8] sm:$0xf]
  %v189 = vld [vmem:[%s1 + $0xac] sm:$0xf]
  %v190 = vld [vmem:[%s1 + $0xb0] sm:$0xf]
  %v191 = vld [vmem:[%s1 + $0xb4] sm:$0xf]
  %v192 = vld [vmem:[%s1 + $0xb8] sm:$0xf]
  %v193 = vld [vmem:[%s1 + $0xbc] sm:$0xf]
  %v194 = vld [vmem:[%s2] sm:$0x1]
  %v196 = vlaneseq
  %v197 = vshrl.u32 %v196, 7
  %v198 = vsub.s32 0, %v197
  %v199 = vrot.slane %v194, %v198
  %v249 = vunpack.c.l.b16 %v146
  %v250 = vunpack.c.l.b16 %v147
  %v251 = vunpack.c.l.b16 %v148
  %v252 = vunpack.c.l.b16 %v149
  %v253 = vunpack.c.l.b16 %v150
  %v254 = vunpack.c.l.b16 %v151
  %v255 = vunpack.c.l.b16 %v152
  %v256 = vunpack.c.l.b16 %v153
  %v257 = vunpack.c.l.b16 %v154
  %v258 = vunpack.c.l.b16 %v155
  %v259 = vunpack.c.l.b16 %v156
  %v260 = vunpack.c.l.b16 %v157
  %v261 = vunpack.c.l.b16 %v158
  %v262 = vunpack.c.l.b16 %v159
  %v263 = vunpack.c.l.b16 %v160
  %v264 = vunpack.c.l.b16 %v161
  %v265 = vunpack.c.l.b16 %v162
  %v266 = vunpack.c.l.b16 %v163
  %v267 = vunpack.c.l.b16 %v164
  %v268 = vunpack.c.l.b16 %v165
  %v269 = vunpack.c.l.b16 %v166
  %v270 = vunpack.c.l.b16 %v167
  %v271 = vunpack.c.l.b16 %v168
  %v272 = vunpack.c.l.b16 %v169
  %v273 = vunpack.c.l.b16 %v170
  %v274 = vunpack.c.l.b16 %v171
  %v275 = vunpack.c.l.b16 %v172
  %v276 = vunpack.c.l.b16 %v173
  %v277 = vunpack.c.l.b16 %v174
  %v278 = vunpack.c.l.b16 %v175
  %v279 = vunpack.c.l.b16 %v176
  %v280 = vunpack.c.l.b16 %v177
  %v281 = vunpack.c.l.b16 %v178
  %v282 = vunpack.c.l.b16 %v179
  %v283 = vunpack.c.l.b16 %v180
  %v284 = vunpack.c.l.b16 %v181
  %v285 = vunpack.c.l.b16 %v182
  %v286 = vunpack.c.l.b16 %v183
  %v287 = vunpack.c.l.b16 %v184
  %v288 = vunpack.c.l.b16 %v185
  %v289 = vunpack.c.l.b16 %v186
  %v290 = vunpack.c.l.b16 %v187
  %v291 = vunpack.c.l.b16 %v188
  %v292 = vunpack.c.l.b16 %v189
  %v293 = vunpack.c.l.b16 %v190
  %v294 = vunpack.c.l.b16 %v191
  %v295 = vunpack.c.l.b16 %v192
  %v296 = vunpack.c.l.b16 %v193
  %v297 = vpack.c.b16 %v250, %v249
  %v298 = vpack.c.b16 %v252, %v251
  %v299 = vpack.c.b16 %v254, %v253
  %v300 = vpack.c.b16 %v256, %v255
  %v301 = vpack.c.b16 %v258, %v257
  %v302 = vpack.c.b16 %v260, %v259
  %v303 = vpack.c.b16 %v262, %v261
  %v304 = vpack.c.b16 %v264, %v263
  %v305 = vpack.c.b16 %v266, %v265
  %v306 = vpack.c.b16 %v268, %v267
  %v307 = vpack.c.b16 %v270, %v269
  %v308 = vpack.c.b16 %v272, %v271
  %v309 = vpack.c.b16 %v274, %v273
  %v310 = vpack.c.b16 %v276, %v275
  %v311 = vpack.c.b16 %v278, %v277
  %v312 = vpack.c.b16 %v280, %v279
  %v313 = vpack.c.b16 %v282, %v281
  %v314 = vpack.c.b16 %v284, %v283
  %v315 = vpack.c.b16 %v286, %v285
  %v316 = vpack.c.b16 %v288, %v287
  %v317 = vpack.c.b16 %v290, %v289
  %v318 = vpack.c.b16 %v292, %v291
  %v319 = vpack.c.b16 %v294, %v293
  %v320 = vpack.c.b16 %v296, %v295
  %345 = vmatprep.subr.bf16.mxu0 0
  %346 = vmatpush1.bf16.msra.mxu0 %v297
  %347 = vmatprep.subr.bf16.mxu0 0
  %348 = vmatpush1.bf16.msra.mxu0 %v298
  %349 = vmatprep.subr.bf16.mxu0 0
  %350 = vmatpush1.bf16.msra.mxu0 %v299
  %351 = vmatprep.subr.bf16.mxu0 0
  %352 = vmatpush1.bf16.msra.mxu0 %v300
  %353 = vmatprep.subr.bf16.mxu0 0
  %354 = vmatpush1.bf16.msra.mxu0 %v301
  %355 = vmatprep.subr.bf16.mxu0 0
  %356 = vmatpush1.bf16.msra.mxu0 %v302
  %357 = vmatprep.subr.bf16.mxu0 0
  %358 = vmatpush1.bf16.msra.mxu0 %v303
  %359 = vmatprep.subr.bf16.mxu0 0
  %360 = vmatpush1.bf16.msra.mxu0 %v304
  %361 = vmatprep.subr.bf16.mxu0 0
  %362 = vmatpush1.bf16.msra.mxu0 %v305
  %363 = vmatprep.subr.bf16.mxu0 0
  %364 = vmatpush1.bf16.msra.mxu0 %v306
  %365 = vmatprep.subr.bf16.mxu0 0
  %366 = vmatpush1.bf16.msra.mxu0 %v307
  %367 = vmatprep.subr.bf16.mxu0 0
  %368 = vmatpush1.bf16.msra.mxu0 %v308
  %369 = vmatprep.subr.bf16.mxu0 0
  %370 = vmatpush1.bf16.msra.mxu0 %v309
  %371 = vmatprep.subr.bf16.mxu0 0
  %372 = vmatpush1.bf16.msra.mxu0 %v310
  %373 = vmatprep.subr.bf16.mxu0 0
  %374 = vmatpush1.bf16.msra.mxu0 %v311
  %375 = vmatprep.subr.bf16.mxu0 0
  %376 = vmatpush1.bf16.msra.mxu0 %v312
  %377 = vmatprep.mubr.bf16.mxu0 %v141
  %378 = vmatmul.mubr.bf16.gmra.mrb[0].mxu0 %v140
  %v379 = vpop.f32.mrb[0].mxu0
  %v380 = vadd.f32 %v199, %v379
  %v381 = vpop.f32.mrb[0].mxu0
  %v382 = vpop.f32.mrb[0].mxu0
  %v383 = vadd.f32 %v199, %v382
  %v384 = vpop.f32.mrb[0].mxu0
  %385 = vmatprep.mubr.bf16.mxu0 %v144
  %386 = vmatmul.mubr.bf16.gmra.mrb[0].mxu0 %v143
  %v387 = vpop.f32.mrb[0].mxu0
  %v388 = vadd.f32 %v199, %v387
  %v389 = vpop.f32.mrb[0].mxu0
  %v390 = vpop.f32.mrb[0].mxu0
  %v391 = vadd.f32 %v199, %v390
  %v392 = vpop.f32.mrb[0].mxu0
  %393 = vdwg.mxu0
  %394 = vmatprep.subr.bf16.mxu0 0
  %395 = vmatpush1.bf16.msra.mxu0 %v313
  %396 = vmatprep.subr.bf16.mxu0 0
  %397 = vmatpush1.bf16.msra.mxu0 %v314
  %398 = vmatprep.subr.bf16.mxu0 0
  %399 = vmatpush1.bf16.msra.mxu0 %v315
  %400 = vmatprep.subr.bf16.mxu0 0
  %401 = vmatpush1.bf16.msra.mxu0 %v316
  %402 = vmatprep.subr.bf16.mxu0 0
  %403 = vmatpush1.bf16.msra.mxu0 %v317
  %404 = vmatprep.subr.bf16.mxu0 0
  %405 = vmatpush1.bf16.msra.mxu0 %v318
  %406 = vmatprep.subr.bf16.mxu0 0
  %407 = vmatpush1.bf16.msra.mxu0 %v319
  %408 = vmatprep.subr.bf16.mxu0 0
  %409 = vmatpush1.bf16.msra.mxu0 %v320
  %410 = vmatprep.subr.bf16.mxu0 0
  %411 = vmatpush1.bf16.msra.mxu0 0
  %412 = vmatprep.subr.bf16.mxu0 0
  %413 = vmatpush1.bf16.msra.mxu0 0
  %414 = vmatprep.subr.bf16.mxu0 0
  %415 = vmatpush1.bf16.msra.mxu0 0
  %416 = vmatprep.subr.bf16.mxu0 0
  %417 = vmatpush1.bf16.msra.mxu0 0
  %418 = vmatprep.subr.bf16.mxu0 0
  %419 = vmatpush1.bf16.msra.mxu0 0
  %420 = vmatprep.subr.bf16.mxu0 0
  %421 = vmatpush1.bf16.msra.mxu0 0
  %422 = vmatprep.subr.bf16.mxu0 0
  %423 = vmatpush1.bf16.msra.mxu0 0
  %424 = vmatprep.subr.bf16.mxu0 0
  %425 = vmatpush1.bf16.msra.mxu0 0
  %426 = vmatprep.mubr.bf16.mxu0 0
  %427 = vmatmul.mubr.bf16.gmra.mrb[0].mxu0 %v142
  %v428 = vpop.f32.mrb[0].mxu0
  %v429 = vadd.f32 %v380, %v428
  %v430 = vpop.f32.mrb[0].mxu0
  %v431 = vpop.f32.mrb[0].mxu0
  %v432 = vadd.f32 %v383, %v431
  %v433 = vpop.f32.mrb[0].mxu0
  %434 = vmatprep.mubr.bf16.mxu0 0
  %435 = vmatmul.mubr.bf16.gmra.mrb[0].mxu0 %v145
  %v436 = vpop.f32.mrb[0].mxu0
  %v437 = vadd.f32 %v388, %v436
  %v438 = vpop.f32.mrb[0].mxu0
  %v439 = vpop.f32.mrb[0].mxu0
  %v440 = vadd.f32 %v391, %v439
  %v441 = vpop.f32.mrb[0].mxu0
  %442 = vdwg.mxu0
  %v443 = vmul.f32 %v429, 0.2
  %v444 = vmul.f32 %v432, 0.2
  %v445 = vmul.f32 %v437, 0.2
  %v446 = vmul.f32 %v440, 0.2
  %v447 = vmax.f32 %v429, %v443
  %v448 = vmax.f32 %v432, %v444
  %v449 = vmax.f32 %v437, %v445
  %v450 = vmax.f32 %v440, %v446
  %v455 = vrot.slane %v447, 7
  %v456 = vrot.slane %v448, 7
  %v457 = vsel %vm90, %v455, %v456
  %v458 = vrot.slane %v449, 7
  %v459 = vsel %vm90, %v456, %v458
  %v460 = vrot.slane %v450, 7
  %v461 = vsel %vm90, %v458, %v460
  %v466 = vsel %vm90, 0.0, %v455
  %v467 = vrot.slane %v447, 1
  %v468 = vrot.slane %v448, 1
  %v469 = vsel %vm103, %v467, %v468
  %v470 = vrot.slane %v449, 1
  %v471 = vsel %vm103, %v468, %v470
  %v472 = vrot.slane %v450, 1
  %v473 = vsel %vm103, %v470, %v472
  %v478 = vsel %vm103, %v472, 0.0
  %v479 = vsel %vm120, %v466, 0.0
  %v480 = vsel %vm121, %v457, 0.0
  %v481 = vsel %vm122, %v459, 0.0
  %v482 = vsel %vm123, %v461, 0.0
  %v483 = vsel %vm132, %v469, 0.0
  %v484 = vsel %vm133, %v471, 0.0
  %v485 = vsel %vm134, %v473, 0.0
  %v486 = vsel %vm135, %v478, 0.0
  %v487 = vpack.c.bf16 %v480, %v479
  %v488 = vpack.c.bf16 %v448, %v447
  %v489 = vpack.c.bf16 %v484, %v483
  %v490 = vpack.c.bf16 %v482, %v481
  %v491 = vpack.c.bf16 %v450, %v449
  %v492 = vpack.c.bf16 %v486, %v485
  %v493 = vld [vmem:[%s3] sm:$0xf]
  %v494 = vld [vmem:[%s3 + $0x4] sm:$0xf]
  %v495 = vld [vmem:[%s3 + $0x8] sm:$0xf]
  %v496 = vld [vmem:[%s3 + $0xc] sm:$0xf]
  %v497 = vld [vmem:[%s3 + $0x10] sm:$0xf]
  %v498 = vld [vmem:[%s3 + $0x14] sm:$0xf]
  %v499 = vld [vmem:[%s3 + $0x18] sm:$0xf]
  %v500 = vld [vmem:[%s3 + $0x1c] sm:$0xf]
  %v501 = vld [vmem:[%s3 + $0x20] sm:$0xf]
  %v502 = vld [vmem:[%s3 + $0x24] sm:$0xf]
  %v503 = vld [vmem:[%s3 + $0x28] sm:$0xf]
  %v504 = vld [vmem:[%s3 + $0x2c] sm:$0xf]
  %v505 = vld [vmem:[%s3 + $0x30] sm:$0xf]
  %v506 = vld [vmem:[%s3 + $0x34] sm:$0xf]
  %v507 = vld [vmem:[%s3 + $0x38] sm:$0xf]
  %v508 = vld [vmem:[%s3 + $0x3c] sm:$0xf]
  %v509 = vld [vmem:[%s3 + $0x40] sm:$0xf]
  %v510 = vld [vmem:[%s3 + $0x44] sm:$0xf]
  %v511 = vld [vmem:[%s3 + $0x48] sm:$0xf]
  %v512 = vld [vmem:[%s3 + $0x4c] sm:$0xf]
  %v513 = vld [vmem:[%s3 + $0x50] sm:$0xf]
  %v514 = vld [vmem:[%s3 + $0x54] sm:$0xf]
  %v515 = vld [vmem:[%s3 + $0x58] sm:$0xf]
  %v516 = vld [vmem:[%s3 + $0x5c] sm:$0xf]
  %v517 = vld [vmem:[%s3 + $0x60] sm:$0xf]
  %v518 = vld [vmem:[%s3 + $0x64] sm:$0xf]
  %v519 = vld [vmem:[%s3 + $0x68] sm:$0xf]
  %v520 = vld [vmem:[%s3 + $0x6c] sm:$0xf]
  %v521 = vld [vmem:[%s3 + $0x70] sm:$0xf]
  %v522 = vld [vmem:[%s3 + $0x74] sm:$0xf]
  %v523 = vld [vmem:[%s3 + $0x78] sm:$0xf]
  %v524 = vld [vmem:[%s3 + $0x7c] sm:$0xf]
  %v525 = vld [vmem:[%s3 + $0x80] sm:$0xf]
  %v526 = vld [vmem:[%s3 + $0x84] sm:$0xf]
  %v527 = vld [vmem:[%s3 + $0x88] sm:$0xf]
  %v528 = vld [vmem:[%s3 + $0x8c] sm:$0xf]
  %v529 = vld [vmem:[%s3 + $0x90] sm:$0xf]
  %v530 = vld [vmem:[%s3 + $0x94] sm:$0xf]
  %v531 = vld [vmem:[%s3 + $0x98] sm:$0xf]
  %v532 = vld [vmem:[%s3 + $0x9c] sm:$0xf]
  %v533 = vld [vmem:[%s3 + $0xa0] sm:$0xf]
  %v534 = vld [vmem:[%s3 + $0xa4] sm:$0xf]
  %v535 = vld [vmem:[%s3 + $0xa8] sm:$0xf]
  %v536 = vld [vmem:[%s3 + $0xac] sm:$0xf]
  %v537 = vld [vmem:[%s3 + $0xb0] sm:$0xf]
  %v538 = vld [vmem:[%s3 + $0xb4] sm:$0xf]
  %v539 = vld [vmem:[%s3 + $0xb8] sm:$0xf]
  %v540 = vld [vmem:[%s3 + $0xbc] sm:$0xf]
  %v541 = vld [vmem:[%s4] sm:$0x1]
  %v543 = vlaneseq
  %v544 = vshrl.u32 %v543, 7
  %v545 = vsub.s32 0, %v544
  %v546 = vrot.slane %v541, %v545
  %v596 = vunpack.c.l.b16 %v493
  %v597 = vunpack.c.l.b16 %v494
  %v598 = vunpack.c.l.b16 %v495
  %v599 = vunpack.c.l.b16 %v496
  %v600 = vunpack.c.l.b16 %v497
  %v601 = vunpack.c.l.b16 %v498
  %v602 = vunpack.c.l.b16 %v499
  %v603 = vunpack.c.l.b16 %v500
  %v604 = vunpack.c.l.b16 %v501
  %v605 = vunpack.c.l.b16 %v502
  %v606 = vunpack.c.l.b16 %v503
  %v607 = vunpack.c.l.b16 %v504
  %v608 = vunpack.c.l.b16 %v505
  %v609 = vunpack.c.l.b16 %v506
  %v610 = vunpack.c.l.b16 %v507
  %v611 = vunpack.c.l.b16 %v508
  %v612 = vunpack.c.l.b16 %v509
  %v613 = vunpack.c.l.b16 %v510
  %v614 = vunpack.c.l.b16 %v511
  %v615 = vunpack.c.l.b16 %v512
  %v616 = vunpack.c.l.b16 %v513
  %v617 = vunpack.c.l.b16 %v514
  %v618 = vunpack.c.l.b16 %v515
  %v619 = vunpack.c.l.b16 %v516
  %v620 = vunpack.c.l.b16 %v517
  %v621 = vunpack.c.l.b16 %v518
  %v622 = vunpack.c.l.b16 %v519
  %v623 = vunpack.c.l.b16 %v520
  %v624 = vunpack.c.l.b16 %v521
  %v625 = vunpack.c.l.b16 %v522
  %v626 = vunpack.c.l.b16 %v523
  %v627 = vunpack.c.l.b16 %v524
  %v628 = vunpack.c.l.b16 %v525
  %v629 = vunpack.c.l.b16 %v526
  %v630 = vunpack.c.l.b16 %v527
  %v631 = vunpack.c.l.b16 %v528
  %v632 = vunpack.c.l.b16 %v529
  %v633 = vunpack.c.l.b16 %v530
  %v634 = vunpack.c.l.b16 %v531
  %v635 = vunpack.c.l.b16 %v532
  %v636 = vunpack.c.l.b16 %v533
  %v637 = vunpack.c.l.b16 %v534
  %v638 = vunpack.c.l.b16 %v535
  %v639 = vunpack.c.l.b16 %v536
  %v640 = vunpack.c.l.b16 %v537
  %v641 = vunpack.c.l.b16 %v538
  %v642 = vunpack.c.l.b16 %v539
  %v643 = vunpack.c.l.b16 %v540
  %v644 = vpack.c.b16 %v597, %v596
  %v645 = vpack.c.b16 %v599, %v598
  %v646 = vpack.c.b16 %v601, %v600
  %v647 = vpack.c.b16 %v603, %v602
  %v648 = vpack.c.b16 %v605, %v604
  %v649 = vpack.c.b16 %v607, %v606
  %v650 = vpack.c.b16 %v609, %v608
  %v651 = vpack.c.b16 %v611, %v610
  %v652 = vpack.c.b16 %v613, %v612
  %v653 = vpack.c.b16 %v615, %v614
  %v654 = vpack.c.b16 %v617, %v616
  %v655 = vpack.c.b16 %v619, %v618
  %v656 = vpack.c.b16 %v621, %v620
  %v657 = vpack.c.b16 %v623, %v622
  %v658 = vpack.c.b16 %v625, %v624
  %v659 = vpack.c.b16 %v627, %v626
  %v660 = vpack.c.b16 %v629, %v628
  %v661 = vpack.c.b16 %v631, %v630
  %v662 = vpack.c.b16 %v633, %v632
  %v663 = vpack.c.b16 %v635, %v634
  %v664 = vpack.c.b16 %v637, %v636
  %v665 = vpack.c.b16 %v639, %v638
  %v666 = vpack.c.b16 %v641, %v640
  %v667 = vpack.c.b16 %v643, %v642
  %692 = vmatprep.subr.bf16.mxu0 0
  %693 = vmatpush1.bf16.msra.mxu0 %v644
  %694 = vmatprep.subr.bf16.mxu0 0
  %695 = vmatpush1.bf16.msra.mxu0 %v645
  %696 = vmatprep.subr.bf16.mxu0 0
  %697 = vmatpush1.bf16.msra.mxu0 %v646
  %698 = vmatprep.subr.bf16.mxu0 0
  %699 = vmatpush1.bf16.msra.mxu0 %v647
  %700 = vmatprep.subr.bf16.mxu0 0
  %701 = vmatpush1.bf16.msra.mxu0 %v648
  %702 = vmatprep.subr.bf16.mxu0 0
  %703 = vmatpush1.bf16.msra.mxu0 %v649
  %704 = vmatprep.subr.bf16.mxu0 0
  %705 = vmatpush1.bf16.msra.mxu0 %v650
  %706 = vmatprep.subr.bf16.mxu0 0
  %707 = vmatpush1.bf16.msra.mxu0 %v651
  %708 = vmatprep.subr.bf16.mxu0 0
  %709 = vmatpush1.bf16.msra.mxu0 %v652
  %710 = vmatprep.subr.bf16.mxu0 0
  %711 = vmatpush1.bf16.msra.mxu0 %v653
  %712 = vmatprep.subr.bf16.mxu0 0
  %713 = vmatpush1.bf16.msra.mxu0 %v654
  %714 = vmatprep.subr.bf16.mxu0 0
  %715 = vmatpush1.bf16.msra.mxu0 %v655
  %716 = vmatprep.subr.bf16.mxu0 0
  %717 = vmatpush1.bf16.msra.mxu0 %v656
  %718 = vmatprep.subr.bf16.mxu0 0
  %719 = vmatpush1.bf16.msra.mxu0 %v657
  %720 = vmatprep.subr.bf16.mxu0 0
  %721 = vmatpush1.bf16.msra.mxu0 %v658
  %722 = vmatprep.subr.bf16.mxu0 0
  %723 = vmatpush1.bf16.msra.mxu0 %v659
  %724 = vmatprep.mubr.bf16.mxu0 %v488
  %725 = vmatmul.mubr.bf16.gmra.mrb[0].mxu0 %v487
  %v726 = vpop.f32.mrb[0].mxu0
  %v727 = vadd.f32 %v546, %v726
  %v728 = vpop.f32.mrb[0].mxu0
  %v729 = vpop.f32.mrb[0].mxu0
  %v730 = vadd.f32 %v546, %v729
  %v731 = vpop.f32.mrb[0].mxu0
  %732 = vmatprep.mubr.bf16.mxu0 %v491
  %733 = vmatmul.mubr.bf16.gmra.mrb[0].mxu0 %v490
  %v734 = vpop.f32.mrb[0].mxu0
  %v735 = vadd.f32 %v546, %v734
  %v736 = vpop.f32.mrb[0].mxu0
  %v737 = vpop.f32.mrb[0].mxu0
  %v738 = vadd.f32 %v546, %v737
  %v739 = vpop.f32.mrb[0].mxu0
  %740 = vdwg.mxu0
  %741 = vmatprep.subr.bf16.mxu0 0
  %742 = vmatpush1.bf16.msra.mxu0 %v660
  %743 = vmatprep.subr.bf16.mxu0 0
  %744 = vmatpush1.bf16.msra.mxu0 %v661
  %745 = vmatprep.subr.bf16.mxu0 0
  %746 = vmatpush1.bf16.msra.mxu0 %v662
  %747 = vmatprep.subr.bf16.mxu0 0
  %748 = vmatpush1.bf16.msra.mxu0 %v663
  %749 = vmatprep.subr.bf16.mxu0 0
  %750 = vmatpush1.bf16.msra.mxu0 %v664
  %751 = vmatprep.subr.bf16.mxu0 0
  %752 = vmatpush1.bf16.msra.mxu0 %v665
  %753 = vmatprep.subr.bf16.mxu0 0
  %754 = vmatpush1.bf16.msra.mxu0 %v666
  %755 = vmatprep.subr.bf16.mxu0 0
  %756 = vmatpush1.bf16.msra.mxu0 %v667
  %757 = vmatprep.subr.bf16.mxu0 0
  %758 = vmatpush1.bf16.msra.mxu0 0
  %759 = vmatprep.subr.bf16.mxu0 0
  %760 = vmatpush1.bf16.msra.mxu0 0
  %761 = vmatprep.subr.bf16.mxu0 0
  %762 = vmatpush1.bf16.msra.mxu0 0
  %763 = vmatprep.subr.bf16.mxu0 0
  %764 = vmatpush1.bf16.msra.mxu0 0
  %765 = vmatprep.subr.bf16.mxu0 0
  %766 = vmatpush1.bf16.msra.mxu0 0
  %767 = vmatprep.subr.bf16.mxu0 0
  %768 = vmatpush1.bf16.msra.mxu0 0
  %769 = vmatprep.subr.bf16.mxu0 0
  %770 = vmatpush1.bf16.msra.mxu0 0
  %771 = vmatprep.subr.bf16.mxu0 0
  %772 = vmatpush1.bf16.msra.mxu0 0
  %773 = vmatprep.mubr.bf16.mxu0 0
  %774 = vmatmul.mubr.bf16.gmra.mrb[0].mxu0 %v489
  %v775 = vpop.f32.mrb[0].mxu0
  %v776 = vadd.f32 %v727, %v775
  %v777 = vpop.f32.mrb[0].mxu0
  %v778 = vpop.f32.mrb[0].mxu0
  %v779 = vadd.f32 %v730, %v778
  %v780 = vpop.f32.mrb[0].mxu0
  %781 = vmatprep.mubr.bf16.mxu0 0
  %782 = vmatmul.mubr.bf16.gmra.mrb[0].mxu0 %v492
  %v783 = vpop.f32.mrb[0].mxu0
  %v784 = vadd.f32 %v735, %v783
  %v785 = vpop.f32.mrb[0].mxu0
  %v786 = vpop.f32.mrb[0].mxu0
  %v787 = vadd.f32 %v738, %v786
  %v788 = vpop.f32.mrb[0].mxu0
  %789 = vdwg.mxu0
  %v790 = vadd.f32 %v776, %v82
  %v791 = vadd.f32 %v779, %v83
  %v792 = vadd.f32 %v784, %v84
  %v793 = vadd.f32 %v787, %v85
  %v794 = vmul.f32 %v790, 0.2
  %v795 = vmul.f32 %v791, 0.2
  %v796 = vmul.f32 %v792, 0.2
  %v797 = vmul.f32 %v793, 0.2
  %v798 = vmax.f32 %v790, %v794
  %v799 = vmax.f32 %v791, %v795
  %v800 = vmax.f32 %v792, %v796
  %v801 = vmax.f32 %v793, %v797
  %802 = vst [vmem:[%s5] sm:$0xff] %v798
  %803 = vst [vmem:[%s5 + $0x8] sm:$0xff] %v799
  %804 = vst [vmem:[%s5 + $0x10] sm:$0xff] %v800
  %805 = vst [vmem:[%s5 + $0x18] sm:$0xff] %v801
  // Predicated region
  $region22: #{residual_block_forward.1} parent=0 // pred_check
    _
  $region23: #{residual_block_forward.1} parent=0 // pred_check_branch
    %807 = sbr.rel (0) target = $region25
  $region24: #{residual_block_forward.1} parent=0 // pred_region
    _
  $region25: #{residual_block_forward.1} parent=0 // pred_fallthru
    _
  // Predicated region
  $region26: #{residual_block_forward.1} parent=0 // pred_check
    _
  $region27: #{residual_block_forward.1} parent=0 // pred_check_branch
    %809 = sbr.rel (0) target = $region29
  $region28: #{residual_block_forward.1} parent=0 // pred_region
    _
  $region29: #{residual_block_forward.1} parent=0 // pred_fallthru
    _

</llo_original>
